<compile_context>
chip_gen: v7x
topology: tpu7x:2x2x1
jax: 0.10.0
libtpu: 0.0.40
codegen_flags: <defaults>
</compile_context>

<pallas_src>
import functools

import jax
import jax.numpy as jnp
from jax.experimental import pallas as pl
from jax.experimental.pallas import tpu as pltpu


# ----------------------------------------------------------------------------
# Kernel 1: fused multi-head projection (+ folded attention row/col terms)
# ----------------------------------------------------------------------------
def _gat_proj_kernel(x_ref, w_ref, wb_ref, wa_ref, c_ref, h_ref, s_ref, *,
                     mm_dtype):
    x = x_ref[...].astype(mm_dtype)
    h = jnp.dot(x, w_ref[...].astype(mm_dtype),
                preferred_element_type=jnp.float32) + wb_ref[...]
    h_ref[...] = h.astype(h_ref.dtype)                       # (TR, H*F)
    s_ref[...] = jnp.dot(x, wa_ref[...].astype(mm_dtype),
                         preferred_element_type=jnp.float32) + c_ref[...]  # (TR, 2H)


def gat_project(x, layer, *, row_block=128, bf16_matmul=False):
    N, Fin = x.shape
    H, F = layer["num_heads"], layer["head_dim"]
    HF, H2 = H * F, 2 * H
    TR = row_block
    assert N % TR == 0, "pad N to a multiple of row_block first"
    mm_dtype = jnp.bfloat16 if bf16_matmul else jnp.float32
    h_dtype = jnp.bfloat16 if bf16_matmul else jnp.float32   # halves h DMA on v6e/v7x

    grid_spec = pltpu.PrefetchScalarGridSpec(
        num_scalar_prefetch=0,
        grid=(N // TR,),
        in_specs=[
            pl.BlockSpec((TR, Fin), lambda i: (i, 0)),   # X row block
            pl.BlockSpec((Fin, HF), lambda i: (0, 0)),   # W_all    (resident)
            pl.BlockSpec((1, HF), lambda i: (0, 0)),     # wb
            pl.BlockSpec((Fin, H2), lambda i: (0, 0)),   # [Wa1|Wa2] (folded)
            pl.BlockSpec((1, H2), lambda i: (0, 0)),     # [c1|c2]   (folded)
        ],
        out_specs=[
            pl.BlockSpec((TR, HF), lambda i: (i, 0)),    # h
            pl.BlockSpec((TR, H2), lambda i: (i, 0)),    # s12
        ],
    )
    return pl.pallas_call(
        functools.partial(_gat_proj_kernel, mm_dtype=mm_dtype),
        out_shape=(jax.ShapeDtypeStruct((N, HF), h_dtype),
                   jax.ShapeDtypeStruct((N, H2), jnp.float32)),
        grid_spec=grid_spec,
        compiler_params=pltpu.CompilerParams(
            dimension_semantics=("parallel",),
            vmem_limit_bytes=48 * 1024 * 1024),
    )(x, layer["W"], layer["wb"], layer["Wa12"], layer["c12"])


# ----------------------------------------------------------------------------
# Kernel 2: tiled attention (online softmax over column blocks), all heads
# ----------------------------------------------------------------------------
def _gat_attn_kernel(s1_ref, s2t_ref, h_ref, adj_ref, out_ref,
                     m_scr, l_scr, acc_scr, *, num_heads, head_dim,
                     apply_log_softmax, mm_dtype):
    j = pl.program_id(1)
    H, F = num_heads, head_dim
    neg = jnp.float32(-9.0e15)

    @pl.when(j == 0)
    def _init():
        m_scr[...] = jnp.full_like(m_scr, -jnp.inf)
        l_scr[...] = jnp.zeros_like(l_scr)
        acc_scr[...] = jnp.zeros_like(acc_scr)

    # int8 adjacency tile -> mask; compare in integer domain (no f32 convert).
    adj_mask = adj_ref[...].astype(jnp.int32) > 0                      # (TR, TC)
    h_col = h_ref[...]                                                 # (TC, H*F)
    s1 = s1_ref[...]                                                   # (TR, H)
    s2t = s2t_ref[...]                                                 # (H, TC)

    for hh in range(H):
        # e[i, j] = s1[i] + s2[j] ; leaky_relu(0.2) ; adjacency mask
        e = s1[:, hh:hh + 1] + s2t[hh:hh + 1, :]                       # (TR, TC)
        e = jnp.where(e >= 0.0, e, 0.2 * e)
        e = jnp.where(adj_mask, e, neg)

        # --- online (flash-style) softmax update for this head ---
        m_prev = m_scr[:, hh:hh + 1]                                   # (TR, 1)
        m_new = jnp.maximum(m_prev, jnp.max(e, axis=1, keepdims=True))
        alpha = jnp.exp(m_prev - m_new)
        p = jnp.exp(e - m_new)                                         # <= 1
        l_scr[:, hh:hh + 1] = (alpha * l_scr[:, hh:hh + 1]
                               + jnp.sum(p, axis=1, keepdims=True))
        pv = jnp.dot(p.astype(mm_dtype),
                     h_col[:, hh * F:(hh + 1) * F].astype(mm_dtype),
                     preferred_element_type=jnp.float32)               # (TR, F)
        acc_scr[:, hh * F:(hh + 1) * F] = (
            alpha * acc_scr[:, hh * F:(hh + 1) * F] + pv)
        m_scr[:, hh:hh + 1] = m_new

    @pl.when(j == pl.num_programs(1) - 1)
    def _finalize():
        inv_l = pl.reciprocal(l_scr[...], approx=True)                 # (TR, H), EUP
        for hh in range(H):
            acc_scr[:, hh * F:(hh + 1) * F] = (
                acc_scr[:, hh * F:(hh + 1) * F] * inv_l[:, hh:hh + 1])
        o = acc_scr[...]                                               # (TR, H*F)
        # elu(alpha=1); clamp exp so the unselected where-branch stays finite
        o = jnp.where(o > 0.0, o, jnp.exp(jnp.minimum(o, 0.0)) - 1.0)
        if apply_log_softmax:                                          # final layer
            z = o - jnp.max(o, axis=1, keepdims=True)
            o = z - jnp.log(jnp.sum(jnp.exp(z), axis=1, keepdims=True))
        out_ref[...] = o                                               # one dense store


def gat_attention(h, s1, s2t, adj_i8, *, num_heads, head_dim, log_softmax,
                  row_block=128, col_block=128, bf16_matmul=False):
    N, HF = h.shape
    H, F = num_heads, head_dim
    TR, TC = row_block, col_block
    assert N % TR == 0 and N % TC == 0
    mm_dtype = jnp.bfloat16 if bf16_matmul else jnp.float32

    kernel = functools.partial(
        _gat_attn_kernel, num_heads=H, head_dim=F,
        apply_log_softmax=log_softmax, mm_dtype=mm_dtype)

    grid_spec = pltpu.PrefetchScalarGridSpec(
        num_scalar_prefetch=0,
        grid=(N // TR, N // TC),
        in_specs=[
            pl.BlockSpec((TR, H), lambda i, j: (i, 0)),    # s1 rows (query term)
            pl.BlockSpec((H, TC), lambda i, j: (0, j)),    # s2^T cols (key term)
            pl.BlockSpec((TC, HF), lambda i, j: (j, 0)),   # h cols (keys/values)
            pl.BlockSpec((TR, TC), lambda i, j: (i, j)),   # adjacency tile (int8)
        ],
        out_specs=pl.BlockSpec((TR, HF), lambda i, j: (i, 0)),
        scratch_shapes=[
            pltpu.VMEM((TR, H), jnp.float32),    # running max m
            pltpu.VMEM((TR, H), jnp.float32),    # running denom l
            pltpu.VMEM((TR, HF), jnp.float32),   # running numerator acc
        ],
    )
    return pl.pallas_call(
        kernel,
        out_shape=jax.ShapeDtypeStruct((N, HF), jnp.float32),
        grid_spec=grid_spec,
        compiler_params=pltpu.CompilerParams(
            dimension_semantics=("parallel", "arbitrary"),
            vmem_limit_bytes=48 * 1024 * 1024),   # safe on v7x 64 MiB
    )(s1, s2t, h, adj_i8)


# ----------------------------------------------------------------------------
# Host-side parameter fusion (weight-only, done once at init time)
# ----------------------------------------------------------------------------
def prepare_gat_layer(head_params):
    """Stack per-head (W, wb, a1, a2, ab) into one kernel-ready layer."""
    Ws, wbs, a1s, a2s, abs_ = zip(*head_params)
    W_all = jnp.concatenate(Ws, axis=1)                       # (Fin, H*F)
    wb_all = jnp.concatenate(wbs, axis=1)                     # (1, H*F)
    a1 = jnp.concatenate(a1s, axis=0)                         # (H, F)
    a2 = jnp.concatenate(a2s, axis=0)                         # (H, F)
    ab = jnp.concatenate([b.reshape(1) for b in abs_], 0)     # (H,)
    Fin = W_all.shape[0]
    H, F = a1.shape
    W_r = W_all.reshape(Fin, H, F)
    # Fold W.a / wb.a / ab so s1,s2 need only a tiny (Fin, 2H) matmul.
    Wa1 = jnp.einsum("fhd,hd->fh", W_r, a1)                   # (Fin, H)
    Wa2 = jnp.einsum("fhd,hd->fh", W_r, a2)                   # (Fin, H)
    c1 = (jnp.sum(wb_all.reshape(H, F) * a1, axis=1) + ab).reshape(1, H)
    c2 = jnp.sum(wb_all.reshape(H, F) * a2, axis=1).reshape(1, H)
    return dict(W=W_all, wb=wb_all,
                Wa12=jnp.concatenate([Wa1, Wa2], axis=1),     # (Fin, 2H)
                c12=jnp.concatenate([c1, c2], axis=1),        # (1, 2H)
                num_heads=H, head_dim=F)


# ----------------------------------------------------------------------------
# Layer / network wrappers
# ----------------------------------------------------------------------------
def gat_layer(x, layer, adj_i8, *, log_softmax=False, row_block=128,
              col_block=128, bf16_matmul=False):
    H, F = layer["num_heads"], layer["head_dim"]
    h, s12 = gat_project(x, layer, row_block=row_block, bf16_matmul=bf16_matmul)
    s1 = s12[:, :H]                       # (N, H) query-side term
    s2t = jnp.transpose(s12[:, H:])       # (H, N) key-side term (tiny transpose)
    return gat_attention(h, s1, s2t, adj_i8, num_heads=H, head_dim=F,
                         log_softmax=log_softmax, row_block=row_block,
                         col_block=col_block, bf16_matmul=bf16_matmul)


def gat_forward(x, adj, hidden_layer, out_layer, *, block=128,
                bf16_matmul=False):
    """Full GAT forward.  adj may be any numeric dtype (>0 == edge)."""
    N = x.shape[0]
    Np = -(-N // block) * block           # pad to a multiple of the tile size
    adj_i8 = (adj > 0).astype(jnp.int8)   # compact mask for the kernel
    if Np != N:
        pad = Np - N
        x = jnp.pad(x, ((0, pad), (0, 0)))
        adj_i8 = jnp.pad(adj_i8, ((0, pad), (0, pad)))  # padded cols are masked
    h = gat_layer(x, hidden_layer, adj_i8, log_softmax=False,
                  row_block=block, col_block=block, bf16_matmul=bf16_matmul)
    o = gat_layer(h, out_layer, adj_i8, log_softmax=True,
                  row_block=block, col_block=block, bf16_matmul=bf16_matmul)
    return o[:N]                          # drop padded rows


# ----------------------------------------------------------------------------
# Parameter initialization (deterministic, mimics nn.Linear fan-in uniform)
# ----------------------------------------------------------------------------
def _init_linear(key, fan_in, fan_out):
    kw, kb = jax.random.split(key)
    bound = 1.0 / jnp.sqrt(jnp.float32(fan_in))
    w = jax.random.uniform(kw, (fan_in, fan_out), jnp.float32, -bound, bound)
    b = jax.random.uniform(kb, (1, fan_out), jnp.float32, -bound, bound)
    return w, b


def init_gat_layer(key, fin, fout):
    k1, k2 = jax.random.split(key)
    W, wb = _init_linear(k1, fin, fout)           # (Fin, Fout), (1, Fout)
    a_w, a_b = _init_linear(k2, 2 * fout, 1)      # (2*Fout, 1), (1, 1)
    a1 = a_w[:fout, :].T                          # (1, Fout)  -> dot with h_i
    a2 = a_w[fout:, :].T                          # (1, Fout)  -> dot with h_j
    return (W, wb, a1, a2, a_b)


# ----------------------------------------------------------------------------
# Pure-JAX reference (mirrors the PyTorch module exactly)
# ----------------------------------------------------------------------------
def _ref_layer(x, params, adj):
    W, wb, a1, a2, ab = params
    h = x @ W + wb
    e = (h @ a1[0])[:, None] + (h @ a2[0])[None, :] + ab[0, 0]
    e = jnp.where(e >= 0.0, e, 0.2 * e)
    att = jnp.where(adj > 0.0, e, -9.0e15)
    att = jax.nn.softmax(att, axis=1)
    hp = att @ h
    return jnp.where(hp > 0.0, hp, jnp.exp(hp) - 1.0)


def _ref_gat(x, adj, head_params, out_params):
    xc = jnp.concatenate([_ref_layer(x, p, adj) for p in head_params], axis=1)
    o = _ref_layer(xc, out_params, adj)
    return jax.nn.log_softmax(o, axis=1)


# ----------------------------------------------------------------------------
if __name__ == "__main__":
    # N not a multiple of 128 -> exercises the pad-and-mask path; pads to 256,
    # which also gives 2 row blocks so the "parallel" axis can use both v7x TCs.
    N = 250
    in_features = 32
    hidden_features = 16
    out_features = 8
    num_heads = 4

    key = jax.random.PRNGKey(0)
    k_x, k_adj, k_params = jax.random.split(key, 3)

    X = jax.random.normal(k_x, (N, in_features), jnp.float32)
    adj = (jax.random.uniform(k_adj, (N, N)) > 0.7).astype(jnp.float32)
    adj = jnp.maximum(adj, jnp.eye(N, dtype=jnp.float32))    # self-loops

    head_keys = jax.random.split(k_params, num_heads + 1)
    head_params = [init_gat_layer(head_keys[i], in_features, hidden_features)
                   for i in range(num_heads)]
    out_params = init_gat_layer(head_keys[-1], hidden_features * num_heads,
                                out_features)

    hidden_layer = prepare_gat_layer(head_params)      # heads fused once
    out_layer = prepare_gat_layer([out_params])        # single-"head" out layer

    out = gat_forward(X, adj, hidden_layer, out_layer)
    out = jax.block_until_ready(out)

    ref = _ref_gat(X, adj, head_params, out_params)
    assert out.shape == (N, out_features)
    err = float(jnp.max(jnp.abs(out - ref)))
    assert err < 2e-2, f"max |err| = {err}"

    print("KERNEL_OK")
</pallas_src>

<mosaic_0001>
module attributes {stable_mosaic.version = 11 : i64} {
  func.func @_gat_proj_kernel(%arg0: i32, %arg1: memref<128x32xf32, #tpu.memory_space<vmem>>, %arg2: memref<32x64xf32, #tpu.memory_space<vmem>>, %arg3: memref<1x64xf32, #tpu.memory_space<vmem>>, %arg4: memref<32x8xf32, #tpu.memory_space<vmem>>, %arg5: memref<1x8xf32, #tpu.memory_space<vmem>>, %arg6: memref<128x64xf32, #tpu.memory_space<vmem>>, %arg7: memref<128x8xf32, #tpu.memory_space<vmem>>) attributes {dimension_semantics = [#tpu.dimension_semantics<parallel>], iteration_bounds = array<i64: 2>, scalar_prefetch = 0 : i64, scratch_operands = 0 : i64, tpu.core_type = #tpu.core_type<tc>, window_params = [{transform_indices = @transform_0, window_bounds = array<i64: 128, 32>}, {pipeline_mode = #tpu.pipeline_mode<synchronous>, transform_indices = @transform_1, window_bounds = array<i64: 32, 64>}, {pipeline_mode = #tpu.pipeline_mode<synchronous>, transform_indices = @transform_2, window_bounds = array<i64: 1, 64>}, {pipeline_mode = #tpu.pipeline_mode<synchronous>, transform_indices = @transform_3, window_bounds = array<i64: 32, 8>}, {pipeline_mode = #tpu.pipeline_mode<synchronous>, transform_indices = @transform_4, window_bounds = array<i64: 1, 8>}, {transform_indices = @transform_5, window_bounds = array<i64: 128, 64>}, {transform_indices = @transform_6, window_bounds = array<i64: 128, 8>}]} {
    %c0 = arith.constant 0 : index
    %c0_0 = arith.constant 0 : index
    %0 = vector.load %arg1[%c0, %c0_0] : memref<128x32xf32, #tpu.memory_space<vmem>>, vector<128x32xf32>
    %c0_1 = arith.constant 0 : index
    %c0_2 = arith.constant 0 : index
    %1 = vector.load %arg2[%c0_1, %c0_2] : memref<32x64xf32, #tpu.memory_space<vmem>>, vector<32x64xf32>
    %cst = arith.constant dense<0.000000e+00> : vector<128x64xf32>
    %2 = tpu.matmul %0, %1, %cst {dimension_numbers = #tpu.dot_dimension_numbers<[1], [0], [0], [1], [0, 0, 1, 1], [], []>} : vector<128x32xf32>, vector<32x64xf32>, vector<128x64xf32> -> vector<128x64xf32>
    %c0_3 = arith.constant 0 : index
    %c0_4 = arith.constant 0 : index
    %3 = vector.load %arg3[%c0_3, %c0_4] : memref<1x64xf32, #tpu.memory_space<vmem>>, vector<1x64xf32>
    %4 = vector.broadcast %3 : vector<1x64xf32> to vector<128x64xf32>
    %5 = arith.addf %2, %4 : vector<128x64xf32>
    %c0_5 = arith.constant 0 : index
    %c0_6 = arith.constant 0 : index
    %6 = vector.load %arg6[%c0_5, %c0_6] : memref<128x64xf32, #tpu.memory_space<vmem>>, vector<128x64xf32>
    tpu.vector_store %arg6[%c0_5, %c0_6], %5 {strides = array<i32>} : memref<128x64xf32, #tpu.memory_space<vmem>>, vector<128x64xf32>,
    %c0_7 = arith.constant 0 : index
    %c0_8 = arith.constant 0 : index
    %7 = vector.load %arg4[%c0_7, %c0_8] : memref<32x8xf32, #tpu.memory_space<vmem>>, vector<32x8xf32>
    %cst_9 = arith.constant dense<0.000000e+00> : vector<128x8xf32>
    %8 = tpu.matmul %0, %7, %cst_9 {dimension_numbers = #tpu.dot_dimension_numbers<[1], [0], [0], [1], [0, 0, 1, 1], [], []>} : vector<128x32xf32>, vector<32x8xf32>, vector<128x8xf32> -> vector<128x8xf32>
    %c0_10 = arith.constant 0 : index
    %c0_11 = arith.constant 0 : index
    %9 = vector.load %arg5[%c0_10, %c0_11] : memref<1x8xf32, #tpu.memory_space<vmem>>, vector<1x8xf32>
    %10 = vector.broadcast %9 : vector<1x8xf32> to vector<128x8xf32>
    %11 = arith.addf %8, %10 : vector<128x8xf32>
    %c0_12 = arith.constant 0 : index
    %c0_13 = arith.constant 0 : index
    %12 = vector.load %arg7[%c0_12, %c0_13] : memref<128x8xf32, #tpu.memory_space<vmem>>, vector<128x8xf32>
    tpu.vector_store %arg7[%c0_12, %c0_13], %11 {strides = array<i32>} : memref<128x8xf32, #tpu.memory_space<vmem>>, vector<128x8xf32>,
    return
  }
  func.func @transform_0(%arg0: i32) -> (i32, i32) {
    %c0_i32 = arith.constant 0 : i32
    %c0_i32_0 = arith.constant 0 : i32
    return %arg0, %c0_i32 : i32, i32
  }
  func.func @transform_1(%arg0: i32) -> (i32, i32) {
    %c0_i32 = arith.constant 0 : i32
    %c0_i32_0 = arith.constant 0 : i32
    %c0_i32_1 = arith.constant 0 : i32
    return %c0_i32, %c0_i32_0 : i32, i32
  }
  func.func @transform_2(%arg0: i32) -> (i32, i32) {
    %c0_i32 = arith.constant 0 : i32
    %c0_i32_0 = arith.constant 0 : i32
    %c0_i32_1 = arith.constant 0 : i32
    return %c0_i32, %c0_i32_0 : i32, i32
  }
  func.func @transform_3(%arg0: i32) -> (i32, i32) {
    %c0_i32 = arith.constant 0 : i32
    %c0_i32_0 = arith.constant 0 : i32
    %c0_i32_1 = arith.constant 0 : i32
    return %c0_i32, %c0_i32_0 : i32, i32
  }
  func.func @transform_4(%arg0: i32) -> (i32, i32) {
    %c0_i32 = arith.constant 0 : i32
    %c0_i32_0 = arith.constant 0 : i32
    %c0_i32_1 = arith.constant 0 : i32
    return %c0_i32, %c0_i32_0 : i32, i32
  }
  func.func @transform_5(%arg0: i32) -> (i32, i32) {
    %c0_i32 = arith.constant 0 : i32
    %c0_i32_0 = arith.constant 0 : i32
    return %arg0, %c0_i32 : i32, i32
  }
  func.func @transform_6(%arg0: i32) -> (i32, i32) {
    %c0_i32 = arith.constant 0 : i32
    %c0_i32_0 = arith.constant 0 : i32
    return %arg0, %c0_i32 : i32, i32
  }
}

</mosaic_0001>

<llo_original>
// kernel: tpu_custom_call.1
$region0: #{tpu_custom_call.1}
  #allocation0 [shape = 'u32[]', space=smem, size = 0x4, offset = 0x4, fixed_abs, tag = 'smem constant byte address 0x4 - core index']
  #allocation1 [shape = 'u32[144,128]{1,0:T(1,128)}', space=vmem, size = 0x12000, scoped, tag = 'internal scratch']
  %s0 = inlined_call_operand.vmem [shape: f32[256,32], index: 0, kind: input, shape index: {}]
  %s1 = inlined_call_operand.vmem [shape: f32[32,64], index: 1, kind: input, shape index: {}]
  %s2 = inlined_call_operand.vmem [shape: f32[1,64], index: 2, kind: input, shape index: {}]
  %s3 = inlined_call_operand.vmem [shape: f32[32,8], index: 3, kind: input, shape index: {}]
  %s4 = inlined_call_operand.vmem [shape: f32[1,8], index: 4, kind: input, shape index: {}]
  %s5 = inlined_call_operand.vmem [shape: f32[256,64], index: 5, kind: output, shape index: {0}]
  %s6 = inlined_call_operand.vmem [shape: f32[256,8], index: 6, kind: output, shape index: {1}]
  %7 = xla_tuple %s5, %s6
  %s8 = sld [smem:[#allocation0]]
  $region61: #{tpu_custom_call.1} parent=0
    _
  %s10 = ssub.s32 1, %s8
  %s11 = scalar_select 0, %s10, %s8
  loop: start=0, step=1, limit=4
  $region2: #{tpu_custom_call.1} parent=0 // loop_pre_header
    _
  $region3: #{tpu_custom_call.1} parent=0 // loop_header
    %s13 = sphi 0, %s17
    %p14 = scmp.ge.s32.totalorder %s13, 4
    %s23 = sphi 0, %s25
    %s26 = sphi 0, %s23
    %s27 = sphi 0, %s26
    %s43 = sphi 0, %s27
    %s47 = sphi 0, %s47
    %s49 = sphi 0, %s47
    %s50 = sphi 0, %s49
    %s64 = sphi 0, %s50
    %s68 = sphi 0, %s68
    %s70 = sphi 0, %s68
    %s71 = sphi 0, %s70
    %s85 = sphi 0, %s71
    %s89 = sphi 0, %s89
    %s91 = sphi 0, %s89
    %s92 = sphi 0, %s91
    %s106 = sphi 0, %s92
    %s110 = sphi 0, %s110
    %s112 = sphi 0, %s110
    %s113 = sphi 0, %s112
    %s127 = sphi 0, %s113
    %s133 = sphi 0, %s135
    %s136 = sphi 0, %s133
    %s137 = sphi 0, %s136
    %s153 = sphi 0, %s137
    %s159 = sphi 0, %s161
    %s162 = sphi 0, %s159
    %s163 = sphi 0, %s162
    %s179 = sphi 0, %s163
  $region4: #{tpu_custom_call.1} parent=0 // loop_header_branch
    %16 = sbr.rel (%p14) target = $region8
  $region5: #{tpu_custom_call.1} parent=0 // loop_body
    %s18 = ssub.s32 %s13, 1
    %s19 = ssub.s32 %s13, 2
    %s20 = sadd.s32 %s13, 1
    %s21 = ssub.s32 %s13, %s20
    %p22 = scmp.eq.s32.totalorder %s21, 0
    %s24 = sadd.s32 %s23, 1
    %s25 = scalar_select %p22, %s23, %s24
    %p28 = pneg %p22
    %p29 = scmp.eq.s32.totalorder %s13, 1
    %p30 = por %p28, %p29
    %p31 = scmp.ne.s32.totalorder %s23, %s26
    %p32 = scmp.eq.s32.totalorder %s13, 0
    %p33 = por %p31, %p32
    %p34 = scmp.ne.s32.totalorder %s23, %s26
    %p35 = scmp.eq.s32.totalorder %s18, 1
    %p36 = por %p34, %p35
    %p37 = scmp.ne.s32.totalorder %s26, %s27
    %p38 = scmp.eq.s32.totalorder %s18, 0
    %p39 = por %p37, %p38
    %p40 = scmp.ne.s32.totalorder %s26, %s27
    %p41 = scmp.eq.s32.totalorder %s19, 1
    %p42 = por %p40, %p41
    %p44 = scmp.ne.s32.totalorder %s27, %s43
    %p45 = scmp.eq.s32.totalorder %s19, 0
    %p46 = por %p44, %p45
    %s48 = sadd.s32 %s47, 1
    %p51 = scmp.eq.s32.totalorder %s13, 1
    %p52 = scmp.ne.s32.totalorder %s47, %s49
    %p53 = scmp.eq.s32.totalorder %s13, 0
    %p54 = por %p52, %p53
    %p55 = scmp.ne.s32.totalorder %s47, %s49
    %p56 = scmp.eq.s32.totalorder %s18, 1
    %p57 = por %p55, %p56
    %p58 = scmp.ne.s32.totalorder %s49, %s50
    %p59 = scmp.eq.s32.totalorder %s18, 0
    %p60 = por %p58, %p59
    %p61 = scmp.ne.s32.totalorder %s49, %s50
    %p62 = scmp.eq.s32.totalorder %s19, 1
    %p63 = por %p61, %p62
    %p65 = scmp.ne.s32.totalorder %s50, %s64
    %p66 = scmp.eq.s32.totalorder %s19, 0
    %p67 = por %p65, %p66
    %s69 = sadd.s32 %s68, 1
    %p72 = scmp.eq.s32.totalorder %s13, 1
    %p73 = scmp.ne.s32.totalorder %s68, %s70
    %p74 = scmp.eq.s32.totalorder %s13, 0
    %p75 = por %p73, %p74
    %p76 = scmp.ne.s32.totalorder %s68, %s70
    %p77 = scmp.eq.s32.totalorder %s18, 1
    %p78 = por %p76, %p77
    %p79 = scmp.ne.s32.totalorder %s70, %s71
    %p80 = scmp.eq.s32.totalorder %s18, 0
    %p81 = por %p79, %p80
    %p82 = scmp.ne.s32.totalorder %s70, %s71
    %p83 = scmp.eq.s32.totalorder %s19, 1
    %p84 = por %p82, %p83
    %p86 = scmp.ne.s32.totalorder %s71, %s85
    %p87 = scmp.eq.s32.totalorder %s19, 0
    %p88 = por %p86, %p87
    %s90 = sadd.s32 %s89, 1
    %p93 = scmp.eq.s32.totalorder %s13, 1
    %p94 = scmp.ne.s32.totalorder %s89, %s91
    %p95 = scmp.eq.s32.totalorder %s13, 0
    %p96 = por %p94, %p95
    %p97 = scmp.ne.s32.totalorder %s89, %s91
    %p98 = scmp.eq.s32.totalorder %s18, 1
    %p99 = por %p97, %p98
    %p100 = scmp.ne.s32.totalorder %s91, %s92
    %p101 = scmp.eq.s32.totalorder %s18, 0
    %p102 = por %p100, %p101
    %p103 = scmp.ne.s32.totalorder %s91, %s92
    %p104 = scmp.eq.s32.totalorder %s19, 1
    %p105 = por %p103, %p104
    %p107 = scmp.ne.s32.totalorder %s92, %s106
    %p108 = scmp.eq.s32.totalorder %s19, 0
    %p109 = por %p107, %p108
    %s111 = sadd.s32 %s110, 1
    %p114 = scmp.eq.s32.totalorder %s13, 1
    %p115 = scmp.ne.s32.totalorder %s110, %s112
    %p116 = scmp.eq.s32.totalorder %s13, 0
    %p117 = por %p115, %p116
    %p118 = scmp.ne.s32.totalorder %s110, %s112
    %p119 = scmp.eq.s32.totalorder %s18, 1
    %p120 = por %p118, %p119
    %p121 = scmp.ne.s32.totalorder %s112, %s113
    %p122 = scmp.eq.s32.totalorder %s18, 0
    %p123 = por %p121, %p122
    %p124 = scmp.ne.s32.totalorder %s112, %s113
    %p125 = scmp.eq.s32.totalorder %s19, 1
    %p126 = por %p124, %p125
    %p128 = scmp.ne.s32.totalorder %s113, %s127
    %p129 = scmp.eq.s32.totalorder %s19, 0
    %p130 = por %p128, %p129
    %s131 = ssub.s32 %s13, %s20
    %p132 = scmp.eq.s32.totalorder %s131, 0
    %s134 = sadd.s32 %s133, 1
    %s135 = scalar_select %p132, %s133, %s134
    %p138 = pneg %p132
    %p139 = scmp.eq.s32.totalorder %s13, 1
    %p140 = por %p138, %p139
    %p141 = scmp.ne.s32.totalorder %s133, %s136
    %p142 = scmp.eq.s32.totalorder %s13, 0
    %p143 = por %p141, %p142
    %p144 = scmp.ne.s32.totalorder %s133, %s136
    %p145 = scmp.eq.s32.totalorder %s18, 1
    %p146 = por %p144, %p145
    %p147 = scmp.ne.s32.totalorder %s136, %s137
    %p148 = scmp.eq.s32.totalorder %s18, 0
    %p149 = por %p147, %p148
    %p150 = scmp.ne.s32.totalorder %s136, %s137
    %p151 = scmp.eq.s32.totalorder %s19, 1
    %p152 = por %p150, %p151
    %p154 = scmp.ne.s32.totalorder %s137, %s153
    %p155 = scmp.eq.s32.totalorder %s19, 0
    %p156 = por %p154, %p155
    %s157 = ssub.s32 %s13, %s20
    %p158 = scmp.eq.s32.totalorder %s157, 0
    %s160 = sadd.s32 %s159, 1
    %s161 = scalar_select %p158, %s159, %s160
    %p164 = pneg %p158
    %p165 = scmp.eq.s32.totalorder %s13, 1
    %p166 = por %p164, %p165
    %p167 = scmp.ne.s32.totalorder %s159, %s162
    %p168 = scmp.eq.s32.totalorder %s13, 0
    %p169 = por %p167, %p168
    %p170 = scmp.ne.s32.totalorder %s159, %s162
    %p171 = scmp.eq.s32.totalorder %s18, 1
    %p172 = por %p170, %p171
    %p173 = scmp.ne.s32.totalorder %s162, %s163
    %p174 = scmp.eq.s32.totalorder %s18, 0
    %p175 = por %p173, %p174
    %p176 = scmp.ne.s32.totalorder %s162, %s163
    %p177 = scmp.eq.s32.totalorder %s19, 1
    %p178 = por %p176, %p177
    %p180 = scmp.ne.s32.totalorder %s163, %s179
    %p181 = scmp.eq.s32.totalorder %s19, 0
    %p182 = por %p180, %p181
    %p183 = scmp.le.s32.totalorder 1, %s13
    %p184 = scmp.lt.s32.totalorder %s13, 3
    %p185 = pnand %p183, %p184
    %p186 = pneg %p185
    // Predicated region
    $region9: #{tpu_custom_call.1} parent=5 // pred_check
      _
    $region10: #{tpu_custom_call.1} parent=5 // pred_check_branch
      %188 = sbr.rel (%p185) target = $region12
    $region11: #{tpu_custom_call.1} parent=5 // pred_region
      %s189 = ssub.s32 %s13, 1
      // Predicated region
      $region13: #{tpu_custom_call.1} parent=11 // pred_check
        %p190 = pneg %p60
      $region14: #{tpu_custom_call.1} parent=11 // pred_check_branch
        %192 = sbr.rel (%p190) target = $region16
      $region15: #{tpu_custom_call.1} parent=11 // pred_region
        _
      $region16: #{tpu_custom_call.1} parent=11 // pred_fallthru
        _
      // Predicated region
      $region17: #{tpu_custom_call.1} parent=11 // pred_check
        %p193 = pneg %p81
      $region18: #{tpu_custom_call.1} parent=11 // pred_check_branch
        %195 = sbr.rel (%p193) target = $region20
      $region19: #{tpu_custom_call.1} parent=11 // pred_region
        _
      $region20: #{tpu_custom_call.1} parent=11 // pred_fallthru
        _
      // Predicated region
      $region21: #{tpu_custom_call.1} parent=11 // pred_check
        %p196 = pneg %p102
      $region22: #{tpu_custom_call.1} parent=11 // pred_check_branch
        %198 = sbr.rel (%p196) target = $region24
      $region23: #{tpu_custom_call.1} parent=11 // pred_region
        _
      $region24: #{tpu_custom_call.1} parent=11 // pred_fallthru
        _
      // Predicated region
      $region25: #{tpu_custom_call.1} parent=11 // pred_check
        %p199 = pneg %p123
      $region26: #{tpu_custom_call.1} parent=11 // pred_check_branch
        %201 = sbr.rel (%p199) target = $region28
      $region27: #{tpu_custom_call.1} parent=11 // pred_region
        _
      $region28: #{tpu_custom_call.1} parent=11 // pred_fallthru
        _
    $region12: #{tpu_custom_call.1} parent=5 // pred_fallthru
      _
    %p202 = scmp.lt.s32.totalorder %s13, 2
    // Predicated region
    $region29: #{tpu_custom_call.1} parent=5 // pred_check
      %p203 = pneg %p202
    $region30: #{tpu_custom_call.1} parent=5 // pred_check_branch
      %205 = sbr.rel (%p203) target = $region32
    $region31: #{tpu_custom_call.1} parent=5 // pred_region
      // Predicated region
      $region33: #{tpu_custom_call.1} parent=31 // pred_check
        %p206 = pneg %p33
      $region34: #{tpu_custom_call.1} parent=31 // pred_check_branch
        %208 = sbr.rel (%p206) target = $region36
      $region35: #{tpu_custom_call.1} parent=31 // pred_region
        %s209 = smul.u32 16, %s13
        %p210 = scmp.lt.s32.totalorder %s209, 31
        %s211 = scalar_select %p210, %s209, 31
        %s212 = smul.addr %s211, 8
        %s213 = scalar_lea.vmem %s0, %s212
        %s214 = smul.u32 16, %s13
      $region36: #{tpu_custom_call.1} parent=31 // pred_fallthru
        _
    $region32: #{tpu_custom_call.1} parent=5 // pred_fallthru
      _
    %p215 = scmp.le.s32.totalorder 1, %s13
    %p216 = scmp.lt.s32.totalorder %s13, 3
    %p217 = pnand %p215, %p216
    %p218 = pneg %p217
    // Predicated region
    $region37: #{tpu_custom_call.1} parent=5 // pred_check
      _
    $region38: #{tpu_custom_call.1} parent=5 // pred_check_branch
      %220 = sbr.rel (%p217) target = $region40
    $region39: #{tpu_custom_call.1} parent=5 // pred_region
      %s221 = ssub.s32 %s13, 1
      %s222 = smul.u32 16, %s18
      %p223 = scmp.lt.s32.totalorder %s222, 31
      %s224 = scalar_select %p223, %s222, 31
      %s225 = smul.addr %s224, 8
      %s226 = scalar_lea.vmem %s0, %s225
      %p227 = pneg %p39
      %p228 = pneg %p36
      %p229 = pneg %p60
      %p230 = pneg %p57
      %p231 = pneg %p81
      %p232 = pneg %p78
      %p233 = pneg %p102
      %p234 = pneg %p99
      %p235 = pneg %p123
      %p236 = pneg %p120
      %p237 = pneg %p149
      %p238 = pneg %p146
      %s239 = smul.u32 16, %s18
      %p240 = scmp.lt.s32.totalorder %s239, 31
      %s241 = scalar_select %p240, %s239, 31
      %s242 = smul.addr %s241, 8
      %s243 = scalar_lea.vmem %s5, %s242
      %p244 = pneg %p175
      %p245 = pneg %p172
      %s246 = smul.u32 16, %s18
      %p247 = scmp.lt.s32.totalorder %s246, 31
      %s248 = scalar_select %p247, %s246, 31
      %s249 = smul.addr %s248, 8
      %s250 = scalar_lea.vmem %s6, %s249
      %s251 = smul.u32 16, %s18
      %p252 = scmp.lt.s32.totalorder %s251, 31
      %s253 = scalar_select %p252, %s251, 31
      %s254 = smul.addr %s253, 8
      %s255 = scalar_lea.vmem %s0, %s254
      %s256 = smul.u32 16, %s18
      %s257 = smul.u32 16, %s18
      %p258 = scmp.lt.s32.totalorder %s257, 31
      %s259 = scalar_select %p258, %s257, 31
      %s260 = smul.addr %s259, 8
      %s261 = scalar_lea.vmem %s5, %s260
      %s262 = smul.u32 16, %s18
      %s263 = smul.u32 16, %s18
      %p264 = scmp.lt.s32.totalorder %s263, 31
      %s265 = scalar_select %p264, %s263, 31
      %s266 = smul.addr %s265, 8
      %s267 = scalar_lea.vmem %s6, %s266
      %s268 = smul.u32 16, %s18
      %v269 = vld [vmem:[%s255] sm:$0xff]
      %v270 = vld [vmem:[%s255 + $0x8] sm:$0xff]
      %v271 = vld [vmem:[%s255 + $0x10] sm:$0xff]
      %v272 = vld [vmem:[%s255 + $0x18] sm:$0xff]
      %v273 = vld [vmem:[%s255 + $0x20] sm:$0xff]
      %v274 = vld [vmem:[%s255 + $0x28] sm:$0xff]
      %v275 = vld [vmem:[%s255 + $0x30] sm:$0xff]
      %v276 = vld [vmem:[%s255 + $0x38] sm:$0xff]
      %v277 = vld [vmem:[%s255 + $0x40] sm:$0xff]
      %v278 = vld [vmem:[%s255 + $0x48] sm:$0xff]
      %v279 = vld [vmem:[%s255 + $0x50] sm:$0xff]
      %v280 = vld [vmem:[%s255 + $0x58] sm:$0xff]
      %v281 = vld [vmem:[%s255 + $0x60] sm:$0xff]
      %v282 = vld [vmem:[%s255 + $0x68] sm:$0xff]
      %v283 = vld [vmem:[%s255 + $0x70] sm:$0xff]
      %v284 = vld [vmem:[%s255 + $0x78] sm:$0xff]
      %v285 = vld [vmem:[%s1] sm:$0xff]
      %v286 = vld [vmem:[%s1 + $0x8] sm:$0xff]
      %v287 = vld [vmem:[%s1 + $0x10] sm:$0xff]
      %v288 = vld [vmem:[%s1 + $0x18] sm:$0xff]
      %v289 = vld [vmem:[%s2] sm:$0x1]
      %v291 = vlaneseq
      %v292 = vshrl.u32 %v291, 7
      %v293 = vsub.s32 0, %v292
      %v294 = vrot.slane %v289, %v293
      %vm296 = vcmask 261120
      %v298 = vsel %vm296, %v269, 0
      %v301 = vsel %vm296, %v270, 0
      %v304 = vsel %vm296, %v271, 0
      %v307 = vsel %vm296, %v272, 0
      %v310 = vsel %vm296, %v273, 0
      %v313 = vsel %vm296, %v274, 0
      %v316 = vsel %vm296, %v275, 0
      %v319 = vsel %vm296, %v276, 0
      %v322 = vsel %vm296, %v277, 0
      %v325 = vsel %vm296, %v278, 0
      %v328 = vsel %vm296, %v279, 0
      %v331 = vsel %vm296, %v280, 0
      %v334 = vsel %vm296, %v281, 0
      %v337 = vsel %vm296, %v282, 0
      %v340 = vsel %vm296, %v283, 0
      %v343 = vsel %vm296, %v284, 0
      %345 = vmatprep.subr.mxu0 0.0
      %346 = vmatpush1.msra.mxu0 %v285
      %347 = vmatprep.subr.mxu0 0.0
      %348 = vmatpush1.msra.mxu0 %v286
      %349 = vmatprep.subr.mxu0 0.0
      %350 = vmatpush1.msra.mxu0 %v287
      %351 = vmatprep.subr.mxu0 0.0
      %352 = vmatpush1.msra.mxu0 %v288
      %353 = vmatprep.subr.mxu0 0.0
      %354 = vmatpush1.msra.mxu0 0.0
      %355 = vmatprep.subr.mxu0 0.0
      %356 = vmatpush1.msra.mxu0 0.0
      %357 = vmatprep.subr.mxu0 0.0
      %358 = vmatpush1.msra.mxu0 0.0
      %359 = vmatprep.subr.mxu0 0.0
      %360 = vmatpush1.msra.mxu0 0.0
      %361 = vmatprep.subr.mxu0 0.0
      %362 = vmatpush1.msra.mxu0 0.0
      %363 = vmatprep.subr.mxu0 0.0
      %364 = vmatpush1.msra.mxu0 0.0
      %365 = vmatprep.subr.mxu0 0.0
      %366 = vmatpush1.msra.mxu0 0.0
      %367 = vmatprep.subr.mxu0 0.0
      %368 = vmatpush1.msra.mxu0 0.0
      %369 = vmatprep.subr.mxu0 0.0
      %370 = vmatpush1.msra.mxu0 0.0
      %371 = vmatprep.subr.mxu0 0.0
      %372 = vmatpush1.msra.mxu0 0.0
      %373 = vmatprep.subr.mxu0 0.0
      %374 = vmatpush1.msra.mxu0 0.0
      %375 = vmatprep.subr.mxu0 0.0
      %376 = vmatpush1.msra.mxu0 0.0
      %377 = vmatprep.subr.mxu0 0.0
      %378 = vmatpush1.msra.mxu0 0.0
      %379 = vmatprep.subr.mxu0 0.0
      %380 = vmatpush1.msra.mxu0 0.0
      %381 = vmatprep.subr.mxu0 0.0
      %382 = vmatpush1.msra.mxu0 0.0
      %383 = vmatprep.subr.mxu0 0.0
      %384 = vmatpush1.msra.mxu0 0.0
      %385 = vmatprep.subr.mxu0 0.0
      %386 = vmatpush1.msra.mxu0 0.0
      %387 = vmatprep.subr.mxu0 0.0
      %388 = vmatpush1.msra.mxu0 0.0
      %389 = vmatprep.subr.mxu0 0.0
      %390 = vmatpush1.msra.mxu0 0.0
      %391 = vmatprep.subr.mxu0 0.0
      %392 = vmatpush1.msra.mxu0 0.0
      %393 = vmatprep.subr.mxu0 0.0
      %394 = vmatpush1.msra.mxu0 0.0
      %395 = vmatprep.subr.mxu0 0.0
      %396 = vmatpush1.msra.mxu0 0.0
      %397 = vmatprep.subr.mxu0 0.0
      %398 = vmatpush1.msra.mxu0 0.0
      %399 = vmatprep.subr.mxu0 0.0
      %400 = vmatpush1.msra.mxu0 0.0
      %401 = vmatprep.subr.mxu0 0.0
      %402 = vmatpush1.msra.mxu0 0.0
      %403 = vmatprep.subr.mxu0 0.0
      %404 = vmatpush1.msra.mxu0 0.0
      %405 = vmatprep.subr.mxu0 0.0
      %406 = vmatpush1.msra.mxu0 0.0
      %407 = vmatprep.subr.mxu0 0.0
      %408 = vmatpush1.msra.mxu0 0.0
      %409 = vmatprep.mubr.f32.mxu0 0.0
      %410 = vmatmul.mubr.f32.gmra.mrb[0].mxu0 %v298
      %v411 = vpop.f32.mrb[0].mxu0
      %v412 = vadd.f32 %v294, %v411
      %v413 = vpop.f32.mrb[0].mxu0
      %414 = vmatprep.mubr.f32.mxu0 0.0
      %415 = vmatmul.mubr.f32.gmra.mrb[0].mxu0 %v301
      %v416 = vpop.f32.mrb[0].mxu0
      %v417 = vadd.f32 %v294, %v416
      %v418 = vpop.f32.mrb[0].mxu0
      %419 = vmatprep.mubr.f32.mxu0 0.0
      %420 = vmatmul.mubr.f32.gmra.mrb[0].mxu0 %v304
      %v421 = vpop.f32.mrb[0].mxu0
      %v422 = vadd.f32 %v294, %v421
      %v423 = vpop.f32.mrb[0].mxu0
      %424 = vmatprep.mubr.f32.mxu0 0.0
      %425 = vmatmul.mubr.f32.gmra.mrb[0].mxu0 %v307
      %v426 = vpop.f32.mrb[0].mxu0
      %v427 = vadd.f32 %v294, %v426
      %v428 = vpop.f32.mrb[0].mxu0
      %429 = vmatprep.mubr.f32.mxu0 0.0
      %430 = vmatmul.mubr.f32.gmra.mrb[0].mxu0 %v310
      %v431 = vpop.f32.mrb[0].mxu0
      %v432 = vadd.f32 %v294, %v431
      %v433 = vpop.f32.mrb[0].mxu0
      %434 = vmatprep.mubr.f32.mxu0 0.0
      %435 = vmatmul.mubr.f32.gmra.mrb[0].mxu0 %v313
      %v436 = vpop.f32.mrb[0].mxu0
      %v437 = vadd.f32 %v294, %v436
      %v438 = vpop.f32.mrb[0].mxu0
      %439 = vmatprep.mubr.f32.mxu0 0.0
      %440 = vmatmul.mubr.f32.gmra.mrb[0].mxu0 %v316
      %v441 = vpop.f32.mrb[0].mxu0
      %v442 = vadd.f32 %v294, %v441
      %v443 = vpop.f32.mrb[0].mxu0
      %444 = vmatprep.mubr.f32.mxu0 0.0
      %445 = vmatmul.mubr.f32.gmra.mrb[0].mxu0 %v319
      %v446 = vpop.f32.mrb[0].mxu0
      %v447 = vadd.f32 %v294, %v446
      %v448 = vpop.f32.mrb[0].mxu0
      %449 = vmatprep.mubr.f32.mxu0 0.0
      %450 = vmatmul.mubr.f32.gmra.mrb[0].mxu0 %v322
      %v451 = vpop.f32.mrb[0].mxu0
      %v452 = vadd.f32 %v294, %v451
      %v453 = vpop.f32.mrb[0].mxu0
      %454 = vmatprep.mubr.f32.mxu0 0.0
      %455 = vmatmul.mubr.f32.gmra.mrb[0].mxu0 %v325
      %v456 = vpop.f32.mrb[0].mxu0
      %v457 = vadd.f32 %v294, %v456
      %v458 = vpop.f32.mrb[0].mxu0
      %459 = vmatprep.mubr.f32.mxu0 0.0
      %460 = vmatmul.mubr.f32.gmra.mrb[0].mxu0 %v328
      %v461 = vpop.f32.mrb[0].mxu0
      %v462 = vadd.f32 %v294, %v461
      %v463 = vpop.f32.mrb[0].mxu0
      %464 = vmatprep.mubr.f32.mxu0 0.0
      %465 = vmatmul.mubr.f32.gmra.mrb[0].mxu0 %v331
      %v466 = vpop.f32.mrb[0].mxu0
      %v467 = vadd.f32 %v294, %v466
      %v468 = vpop.f32.mrb[0].mxu0
      %469 = vmatprep.mubr.f32.mxu0 0.0
      %470 = vmatmul.mubr.f32.gmra.mrb[0].mxu0 %v334
      %v471 = vpop.f32.mrb[0].mxu0
      %v472 = vadd.f32 %v294, %v471
      %v473 = vpop.f32.mrb[0].mxu0
      %474 = vmatprep.mubr.f32.mxu0 0.0
      %475 = vmatmul.mubr.f32.gmra.mrb[0].mxu0 %v337
      %v476 = vpop.f32.mrb[0].mxu0
      %v477 = vadd.f32 %v294, %v476
      %v478 = vpop.f32.mrb[0].mxu0
      %479 = vmatprep.mubr.f32.mxu0 0.0
      %480 = vmatmul.mubr.f32.gmra.mrb[0].mxu0 %v340
      %v481 = vpop.f32.mrb[0].mxu0
      %v482 = vadd.f32 %v294, %v481
      %v483 = vpop.f32.mrb[0].mxu0
      %484 = vmatprep.mubr.f32.mxu0 0.0
      %485 = vmatmul.mubr.f32.gmra.mrb[0].mxu0 %v343
      %v486 = vpop.f32.mrb[0].mxu0
      %v487 = vadd.f32 %v294, %v486
      %v488 = vpop.f32.mrb[0].mxu0
      %489 = vdwg.mxu0
      %vm490 = vcmask 523264
      %491 = vst.msk [vmem:[%s261] sm:$0xff] %vm490, %v412
      %492 = vst.msk [vmem:[%s261 + $0x8] sm:$0xff] %vm490, %v417
      %493 = vst.msk [vmem:[%s261 + $0x10] sm:$0xff] %vm490, %v422
      %494 = vst.msk [vmem:[%s261 + $0x18] sm:$0xff] %vm490, %v427
      %495 = vst.msk [vmem:[%s261 + $0x20] sm:$0xff] %vm490, %v432
      %496 = vst.msk [vmem:[%s261 + $0x28] sm:$0xff] %vm490, %v437
      %497 = vst.msk [vmem:[%s261 + $0x30] sm:$0xff] %vm490, %v442
      %498 = vst.msk [vmem:[%s261 + $0x38] sm:$0xff] %vm490, %v447
      %499 = vst.msk [vmem:[%s261 + $0x40] sm:$0xff] %vm490, %v452
      %500 = vst.msk [vmem:[%s261 + $0x48] sm:$0xff] %vm490, %v457
      %501 = vst.msk [vmem:[%s261 + $0x50] sm:$0xff] %vm490, %v462
      %502 = vst.msk [vmem:[%s261 + $0x58] sm:$0xff] %vm490, %v467
      %503 = vst.msk [vmem:[%s261 + $0x60] sm:$0xff] %vm490, %v472
      %504 = vst.msk [vmem:[%s261 + $0x68] sm:$0xff] %vm490, %v477
      %505 = vst.msk [vmem:[%s261 + $0x70] sm:$0xff] %vm490, %v482
      %506 = vst.msk [vmem:[%s261 + $0x78] sm:$0xff] %vm490, %v487
      %v507 = vld [vmem:[%s3] sm:$0xff]
      %v508 = vld [vmem:[%s3 + $0x8] sm:$0xff]
      %v509 = vld [vmem:[%s3 + $0x10] sm:$0xff]
      %v510 = vld [vmem:[%s3 + $0x18] sm:$0xff]
      %v511 = vld [vmem:[%s4] sm:$0x1]
      %v513 = vlaneseq
      %v514 = vshrl.u32 %v513, 7
      %v515 = vsub.s32 0, %v514
      %v516 = vrot.slane %v511, %v515
      %518 = vmatprep.subr.mxu0 0.0
      %519 = vmatpush1.msra.mxu0 %v507
      %520 = vmatprep.subr.mxu0 0.0
      %521 = vmatpush1.msra.mxu0 %v508
      %522 = vmatprep.subr.mxu0 0.0
      %523 = vmatpush1.msra.mxu0 %v509
      %524 = vmatprep.subr.mxu0 0.0
      %525 = vmatpush1.msra.mxu0 %v510
      %526 = vmatprep.subr.mxu0 0.0
      %527 = vmatpush1.msra.mxu0 0.0
      %528 = vmatprep.subr.mxu0 0.0
      %529 = vmatpush1.msra.mxu0 0.0
      %530 = vmatprep.subr.mxu0 0.0
      %531 = vmatpush1.msra.mxu0 0.0
      %532 = vmatprep.subr.mxu0 0.0
      %533 = vmatpush1.msra.mxu0 0.0
      %534 = vmatprep.subr.mxu0 0.0
      %535 = vmatpush1.msra.mxu0 0.0
      %536 = vmatprep.subr.mxu0 0.0
      %537 = vmatpush1.msra.mxu0 0.0
      %538 = vmatprep.subr.mxu0 0.0
      %539 = vmatpush1.msra.mxu0 0.0
      %540 = vmatprep.subr.mxu0 0.0
      %541 = vmatpush1.msra.mxu0 0.0
      %542 = vmatprep.subr.mxu0 0.0
      %543 = vmatpush1.msra.mxu0 0.0
      %544 = vmatprep.subr.mxu0 0.0
      %545 = vmatpush1.msra.mxu0 0.0
      %546 = vmatprep.subr.mxu0 0.0
      %547 = vmatpush1.msra.mxu0 0.0
      %548 = vmatprep.subr.mxu0 0.0
      %549 = vmatpush1.msra.mxu0 0.0
      %550 = vmatprep.subr.mxu0 0.0
      %551 = vmatpush1.msra.mxu0 0.0
      %552 = vmatprep.subr.mxu0 0.0
      %553 = vmatpush1.msra.mxu0 0.0
      %554 = vmatprep.subr.mxu0 0.0
      %555 = vmatpush1.msra.mxu0 0.0
      %556 = vmatprep.subr.mxu0 0.0
      %557 = vmatpush1.msra.mxu0 0.0
      %558 = vmatprep.subr.mxu0 0.0
      %559 = vmatpush1.msra.mxu0 0.0
      %560 = vmatprep.subr.mxu0 0.0
      %561 = vmatpush1.msra.mxu0 0.0
      %562 = vmatprep.subr.mxu0 0.0
      %563 = vmatpush1.msra.mxu0 0.0
      %564 = vmatprep.subr.mxu0 0.0
      %565 = vmatpush1.msra.mxu0 0.0
      %566 = vmatprep.subr.mxu0 0.0
      %567 = vmatpush1.msra.mxu0 0.0
      %568 = vmatprep.subr.mxu0 0.0
      %569 = vmatpush1.msra.mxu0 0.0
      %570 = vmatprep.subr.mxu0 0.0
      %571 = vmatpush1.msra.mxu0 0.0
      %572 = vmatprep.subr.mxu0 0.0
      %573 = vmatpush1.msra.mxu0 0.0
      %574 = vmatprep.subr.mxu0 0.0
      %575 = vmatpush1.msra.mxu0 0.0
      %576 = vmatprep.subr.mxu0 0.0
      %577 = vmatpush1.msra.mxu0 0.0
      %578 = vmatprep.subr.mxu0 0.0
      %579 = vmatpush1.msra.mxu0 0.0
      %580 = vmatprep.subr.mxu0 0.0
      %581 = vmatpush1.msra.mxu0 0.0
      %582 = vmatprep.mubr.f32.mxu0 0.0
      %583 = vmatmul.mubr.f32.gmra.mrb[0].mxu0 %v298
      %v584 = vpop.f32.mrb[0].mxu0
      %v585 = vadd.f32 %v516, %v584
      %v586 = vpop.f32.mrb[0].mxu0
      %587 = vmatprep.mubr.f32.mxu0 0.0
      %588 = vmatmul.mubr.f32.gmra.mrb[0].mxu0 %v301
      %v589 = vpop.f32.mrb[0].mxu0
      %v590 = vadd.f32 %v516, %v589
      %v591 = vpop.f32.mrb[0].mxu0
      %592 = vmatprep.mubr.f32.mxu0 0.0
      %593 = vmatmul.mubr.f32.gmra.mrb[0].mxu0 %v304
      %v594 = vpop.f32.mrb[0].mxu0
      %v595 = vadd.f32 %v516, %v594
      %v596 = vpop.f32.mrb[0].mxu0
      %597 = vmatprep.mubr.f32.mxu0 0.0
      %598 = vmatmul.mubr.f32.gmra.mrb[0].mxu0 %v307
      %v599 = vpop.f32.mrb[0].mxu0
      %v600 = vadd.f32 %v516, %v599
      %v601 = vpop.f32.mrb[0].mxu0
      %602 = vmatprep.mubr.f32.mxu0 0.0
      %603 = vmatmul.mubr.f32.gmra.mrb[0].mxu0 %v310
      %v604 = vpop.f32.mrb[0].mxu0
      %v605 = vadd.f32 %v516, %v604
      %v606 = vpop.f32.mrb[0].mxu0
      %607 = vmatprep.mubr.f32.mxu0 0.0
      %608 = vmatmul.mubr.f32.gmra.mrb[0].mxu0 %v313
      %v609 = vpop.f32.mrb[0].mxu0
      %v610 = vadd.f32 %v516, %v609
      %v611 = vpop.f32.mrb[0].mxu0
      %612 = vmatprep.mubr.f32.mxu0 0.0
      %613 = vmatmul.mubr.f32.gmra.mrb[0].mxu0 %v316
      %v614 = vpop.f32.mrb[0].mxu0
      %v615 = vadd.f32 %v516, %v614
      %v616 = vpop.f32.mrb[0].mxu0
      %617 = vmatprep.mubr.f32.mxu0 0.0
      %618 = vmatmul.mubr.f32.gmra.mrb[0].mxu0 %v319
      %v619 = vpop.f32.mrb[0].mxu0
      %v620 = vadd.f32 %v516, %v619
      %v621 = vpop.f32.mrb[0].mxu0
      %622 = vmatprep.mubr.f32.mxu0 0.0
      %623 = vmatmul.mubr.f32.gmra.mrb[0].mxu0 %v322
      %v624 = vpop.f32.mrb[0].mxu0
      %v625 = vadd.f32 %v516, %v624
      %v626 = vpop.f32.mrb[0].mxu0
      %627 = vmatprep.mubr.f32.mxu0 0.0
      %628 = vmatmul.mubr.f32.gmra.mrb[0].mxu0 %v325
      %v629 = vpop.f32.mrb[0].mxu0
      %v630 = vadd.f32 %v516, %v629
      %v631 = vpop.f32.mrb[0].mxu0
      %632 = vmatprep.mubr.f32.mxu0 0.0
      %633 = vmatmul.mubr.f32.gmra.mrb[0].mxu0 %v328
      %v634 = vpop.f32.mrb[0].mxu0
      %v635 = vadd.f32 %v516, %v634
      %v636 = vpop.f32.mrb[0].mxu0
      %637 = vmatprep.mubr.f32.mxu0 0.0
      %638 = vmatmul.mubr.f32.gmra.mrb[0].mxu0 %v331
      %v639 = vpop.f32.mrb[0].mxu0
      %v640 = vadd.f32 %v516, %v639
      %v641 = vpop.f32.mrb[0].mxu0
      %642 = vmatprep.mubr.f32.mxu0 0.0
      %643 = vmatmul.mubr.f32.gmra.mrb[0].mxu0 %v334
      %v644 = vpop.f32.mrb[0].mxu0
      %v645 = vadd.f32 %v516, %v644
      %v646 = vpop.f32.mrb[0].mxu0
      %647 = vmatprep.mubr.f32.mxu0 0.0
      %648 = vmatmul.mubr.f32.gmra.mrb[0].mxu0 %v337
      %v649 = vpop.f32.mrb[0].mxu0
      %v650 = vadd.f32 %v516, %v649
      %v651 = vpop.f32.mrb[0].mxu0
      %652 = vmatprep.mubr.f32.mxu0 0.0
      %653 = vmatmul.mubr.f32.gmra.mrb[0].mxu0 %v340
      %v654 = vpop.f32.mrb[0].mxu0
      %v655 = vadd.f32 %v516, %v654
      %v656 = vpop.f32.mrb[0].mxu0
      %657 = vmatprep.mubr.f32.mxu0 0.0
      %658 = vmatmul.mubr.f32.gmra.mrb[0].mxu0 %v343
      %v659 = vpop.f32.mrb[0].mxu0
      %v660 = vadd.f32 %v516, %v659
      %v661 = vpop.f32.mrb[0].mxu0
      %662 = vdwg.mxu0
      %vm663 = vcmask 64512
      %664 = vst.msk [vmem:[%s267] sm:$0xff] %vm663, %v585
      %665 = vst.msk [vmem:[%s267 + $0x8] sm:$0xff] %vm663, %v590
      %666 = vst.msk [vmem:[%s267 + $0x10] sm:$0xff] %vm663, %v595
      %667 = vst.msk [vmem:[%s267 + $0x18] sm:$0xff] %vm663, %v600
      %668 = vst.msk [vmem:[%s267 + $0x20] sm:$0xff] %vm663, %v605
      %669 = vst.msk [vmem:[%s267 + $0x28] sm:$0xff] %vm663, %v610
      %670 = vst.msk [vmem:[%s267 + $0x30] sm:$0xff] %vm663, %v615
      %671 = vst.msk [vmem:[%s267 + $0x38] sm:$0xff] %vm663, %v620
      %672 = vst.msk [vmem:[%s267 + $0x40] sm:$0xff] %vm663, %v625
      %673 = vst.msk [vmem:[%s267 + $0x48] sm:$0xff] %vm663, %v630
      %674 = vst.msk [vmem:[%s267 + $0x50] sm:$0xff] %vm663, %v635
      %675 = vst.msk [vmem:[%s267 + $0x58] sm:$0xff] %vm663, %v640
      %676 = vst.msk [vmem:[%s267 + $0x60] sm:$0xff] %vm663, %v645
      %677 = vst.msk [vmem:[%s267 + $0x68] sm:$0xff] %vm663, %v650
      %678 = vst.msk [vmem:[%s267 + $0x70] sm:$0xff] %vm663, %v655
      %679 = vst.msk [vmem:[%s267 + $0x78] sm:$0xff] %vm663, %v660
      %s680 = smul.u32 16, %s18
      %p681 = scmp.lt.s32.totalorder %s680, 31
      %s682 = scalar_select %p681, %s680, 31
      %s683 = smul.addr %s682, 8
      %s684 = scalar_lea.vmem %s5, %s683
      %s685 = smul.u32 16, %s18
      %p686 = scmp.lt.s32.totalorder %s685, 31
      %s687 = scalar_select %p686, %s685, 31
      %s688 = smul.addr %s687, 8
      %s689 = scalar_lea.vmem %s6, %s688
      // Predicated region
      $region41: #{tpu_custom_call.1} parent=39 // pred_check
        %p690 = pneg %p146
      $region42: #{tpu_custom_call.1} parent=39 // pred_check_branch
        %692 = sbr.rel (%p690) target = $region44
      $region43: #{tpu_custom_call.1} parent=39 // pred_region
        %s693 = smul.u32 16, %s18
      $region44: #{tpu_custom_call.1} parent=39 // pred_fallthru
        _
      // Predicated region
      $region45: #{tpu_custom_call.1} parent=39 // pred_check
        %p694 = pneg %p172
      $region46: #{tpu_custom_call.1} parent=39 // pred_check_branch
        %696 = sbr.rel (%p694) target = $region48
      $region47: #{tpu_custom_call.1} parent=39 // pred_region
        %s697 = smul.u32 16, %s18
      $region48: #{tpu_custom_call.1} parent=39 // pred_fallthru
        _
    $region40: #{tpu_custom_call.1} parent=5 // pred_fallthru
      _
    %p698 = scmp.le.s32.totalorder 2, %s13
    // Predicated region
    $region49: #{tpu_custom_call.1} parent=5 // pred_check
      %p699 = pneg %p698
    $region50: #{tpu_custom_call.1} parent=5 // pred_check_branch
      %701 = sbr.rel (%p699) target = $region52
    $region51: #{tpu_custom_call.1} parent=5 // pred_region
      %s702 = ssub.s32 %s13, 2
      // Predicated region
      $region53: #{tpu_custom_call.1} parent=51 // pred_check
        %p703 = pneg %p152
      $region54: #{tpu_custom_call.1} parent=51 // pred_check_branch
        %705 = sbr.rel (%p703) target = $region56
      $region55: #{tpu_custom_call.1} parent=51 // pred_region
        %s706 = smul.u32 16, %s19
        %p707 = scmp.lt.s32.totalorder %s706, 31
        %s708 = scalar_select %p707, %s706, 31
        %s709 = smul.addr %s708, 8
        %s710 = scalar_lea.vmem %s5, %s709
      $region56: #{tpu_custom_call.1} parent=51 // pred_fallthru
        _
      // Predicated region
      $region57: #{tpu_custom_call.1} parent=51 // pred_check
        %p711 = pneg %p178
      $region58: #{tpu_custom_call.1} parent=51 // pred_check_branch
        %713 = sbr.rel (%p711) target = $region60
      $region59: #{tpu_custom_call.1} parent=51 // pred_region
        %s714 = smul.u32 16, %s19
        %p715 = scmp.lt.s32.totalorder %s714, 31
        %s716 = scalar_select %p715, %s714, 31
        %s717 = smul.addr %s716, 8
        %s718 = scalar_lea.vmem %s6, %s717
      $region60: #{tpu_custom_call.1} parent=51 // pred_fallthru
        _
    $region52: #{tpu_custom_call.1} parent=5 // pred_fallthru
      _
  $region6: #{tpu_custom_call.1} parent=0 // loop_footer
    %s17 = sadd.s32 1, %s13
  $region7: #{tpu_custom_call.1} parent=0 // loop_footer_branch
    %12 = sbr.rel target = $region3
  $region8: #{tpu_custom_call.1} parent=0 // loop_exit
    _

</llo_original>
